<compile_context>
chip_gen: v6e
topology: v6e:2x2x1
jax: 0.10.0
libtpu: 0.0.40
codegen_flags: <defaults>
</compile_context>

<pallas_src>
import functools

import jax
import jax.numpy as jnp
from jax.experimental import pallas as pl
from jax.experimental.pallas import tpu as pltpu


LANE = 128
SUBLANE = 8


def _round_up(x, m):
    return (x + m - 1) // m * m


# ----------------------------------------------------------------------------
# Pallas kernel
# ----------------------------------------------------------------------------
def _disc_linear_kernel(x_ref, w_ref, b_ref, o_ref):
    """One row-tile of o = x @ w + b.

    x_ref: (TM, D), w_ref: (D, Np), b_ref: (1, Np), o_ref: (TM, Np).
    Np is padded to a multiple of 128 lanes -> unmasked stores.
    """
    o_ref[...] = (
        jnp.dot(x_ref[...], w_ref[...], preferred_element_type=jnp.float32)
        + b_ref[...]
    )


# ----------------------------------------------------------------------------
# Wrapper
# ----------------------------------------------------------------------------
def discriminator_forward(params, x):
    """JAX/Pallas equivalent of Discriminator.forward.

    x: (B, 256) float32
    returns: (B * 2,) float32  ==  Linear(256, 2)(RevGrad(x)).view(-1)
    """
    # TODO(synk): RevGrad only flips gradients in backward; forward is identity.
    w = jnp.asarray(params["w"], jnp.float32)   # (2, 256)  PyTorch (out, in)
    b = jnp.asarray(params["b"], jnp.float32)   # (2,)
    x = jnp.asarray(x, jnp.float32)

    B, D = x.shape
    N = w.shape[0]

    # Lane-dense output layout: pad output columns to a full 128-lane vreg.
    n_pad = _round_up(N, LANE)
    w_t = jnp.zeros((D, n_pad), jnp.float32).at[:, :N].set(w.T)
    b_p = jnp.zeros((1, n_pad), jnp.float32).at[:, :N].set(b[None, :])

    # Row tiling: a single grid step for small batches; "parallel" tiles let a
    # v7x megacore split large batches across its two TensorCores.
    b_pad8 = _round_up(B, SUBLANE)
    tm = min(b_pad8, 256)
    b_pad = _round_up(b_pad8, tm)
    if b_pad != B:
        x = jnp.zeros((b_pad, D), jnp.float32).at[:B, :].set(x)

    out = pl.pallas_call(
        _disc_linear_kernel,
        out_shape=jax.ShapeDtypeStruct((b_pad, n_pad), jnp.float32),
        grid_spec=pltpu.PrefetchScalarGridSpec(
            num_scalar_prefetch=0,
            grid=(b_pad // tm,),
            in_specs=[
                pl.BlockSpec((tm, D), lambda i: (i, 0)),
                pl.BlockSpec((D, n_pad), lambda i: (0, 0)),
                pl.BlockSpec((1, n_pad), lambda i: (0, 0)),
            ],
            out_specs=pl.BlockSpec((tm, n_pad), lambda i: (i, 0)),
        ),
        compiler_params=pltpu.CompilerParams(
            dimension_semantics=("parallel",)),
    )(x, w_t, b_p)

    # Slice away the lane padding / row padding, flatten like .view(-1).
    return out[:B, :N].reshape(-1)


# ----------------------------------------------------------------------------
# Deterministic parameter init (matching nn.Linear(256, 2) default init)
# ----------------------------------------------------------------------------
def init_params(key, in_features=256, out_features=2):
    kw, kb = jax.random.split(key)
    bound = 1.0 / jnp.sqrt(jnp.float32(in_features))
    return {
        "w": jax.random.uniform(kw, (out_features, in_features),
                                jnp.float32, -bound, bound),
        "b": jax.random.uniform(kb, (out_features,),
                                jnp.float32, -bound, bound),
    }


# ----------------------------------------------------------------------------
# Main
# ----------------------------------------------------------------------------
if __name__ == "__main__":
    B, D, N = 8, 256, 2   # emb_dim = 256, 2 output classes

    key = jax.random.PRNGKey(0)
    kp, kx = jax.random.split(key)
    params = init_params(kp, D, N)
    x = jax.random.normal(kx, (B, D), jnp.float32)

    fwd = jax.jit(functools.partial(discriminator_forward, params))
    y = fwd(x)
    jax.block_until_ready(y)

    assert y.shape == (B * N,), y.shape

    # Numerical check against plain XLA reference.
    y_ref = (x @ params["w"].T + params["b"]).reshape(-1)
    assert jnp.allclose(y, y_ref, atol=1e-5, rtol=1e-5), \
        float(jnp.max(jnp.abs(y - y_ref)))

    print("KERNEL_OK")
</pallas_src>

<mosaic_0001>
module attributes {stable_mosaic.version = 11 : i64} {
  func.func @_disc_linear_kernel(%arg0: i32, %arg1: memref<8x256xf32, #tpu.memory_space<vmem>>, %arg2: memref<256x128xf32, #tpu.memory_space<vmem>>, %arg3: memref<1x128xf32, #tpu.memory_space<vmem>>, %arg4: memref<8x128xf32, #tpu.memory_space<vmem>>) attributes {dimension_semantics = [#tpu.dimension_semantics<parallel>], iteration_bounds = array<i64: 1>, scalar_prefetch = 0 : i64, scratch_operands = 0 : i64, tpu.core_type = #tpu.core_type<tc>, window_params = [{transform_indices = @transform_0, window_bounds = array<i64: 8, 256>}, {pipeline_mode = #tpu.pipeline_mode<synchronous>, transform_indices = @transform_1, window_bounds = array<i64: 256, 128>}, {pipeline_mode = #tpu.pipeline_mode<synchronous>, transform_indices = @transform_2, window_bounds = array<i64: 1, 128>}, {transform_indices = @transform_3, window_bounds = array<i64: 8, 128>}]} {
    %c0 = arith.constant 0 : index
    %c0_0 = arith.constant 0 : index
    %0 = vector.load %arg1[%c0, %c0_0] : memref<8x256xf32, #tpu.memory_space<vmem>>, vector<8x256xf32>
    %c0_1 = arith.constant 0 : index
    %c0_2 = arith.constant 0 : index
    %1 = vector.load %arg2[%c0_1, %c0_2] : memref<256x128xf32, #tpu.memory_space<vmem>>, vector<256x128xf32>
    %cst = arith.constant dense<0.000000e+00> : vector<8x128xf32>
    %2 = tpu.matmul %0, %1, %cst {dimension_numbers = #tpu.dot_dimension_numbers<[1], [0], [0], [1], [0, 0, 1, 1], [], []>} : vector<8x256xf32>, vector<256x128xf32>, vector<8x128xf32> -> vector<8x128xf32>
    %c0_3 = arith.constant 0 : index
    %c0_4 = arith.constant 0 : index
    %3 = vector.load %arg3[%c0_3, %c0_4] : memref<1x128xf32, #tpu.memory_space<vmem>>, vector<1x128xf32>
    %4 = vector.broadcast %3 : vector<1x128xf32> to vector<8x128xf32>
    %5 = arith.addf %2, %4 : vector<8x128xf32>
    %c0_5 = arith.constant 0 : index
    %c0_6 = arith.constant 0 : index
    %6 = vector.load %arg4[%c0_5, %c0_6] : memref<8x128xf32, #tpu.memory_space<vmem>>, vector<8x128xf32>
    tpu.vector_store %arg4[%c0_5, %c0_6], %5 {strides = array<i32>} : memref<8x128xf32, #tpu.memory_space<vmem>>, vector<8x128xf32>,
    return
  }
  func.func @transform_0(%arg0: i32) -> (i32, i32) {
    %c0_i32 = arith.constant 0 : i32
    %c0_i32_0 = arith.constant 0 : i32
    return %arg0, %c0_i32 : i32, i32
  }
  func.func @transform_1(%arg0: i32) -> (i32, i32) {
    %c0_i32 = arith.constant 0 : i32
    %c0_i32_0 = arith.constant 0 : i32
    %c0_i32_1 = arith.constant 0 : i32
    return %c0_i32, %c0_i32_0 : i32, i32
  }
  func.func @transform_2(%arg0: i32) -> (i32, i32) {
    %c0_i32 = arith.constant 0 : i32
    %c0_i32_0 = arith.constant 0 : i32
    %c0_i32_1 = arith.constant 0 : i32
    return %c0_i32, %c0_i32_0 : i32, i32
  }
  func.func @transform_3(%arg0: i32) -> (i32, i32) {
    %c0_i32 = arith.constant 0 : i32
    %c0_i32_0 = arith.constant 0 : i32
    return %arg0, %c0_i32 : i32, i32
  }
}

</mosaic_0001>

<llo_original>
// kernel: discriminator_forward.1
$region0: #{discriminator_forward.1}
  #allocation0 [shape = 'u32[]', space=smem, size = 0x4, offset = 0x4, fixed_abs, tag = 'smem constant byte address 0x4 - core index']
  #allocation1 [shape = 'u32[144,128]{1,0:T(1,128)}', space=vmem, size = 0x12000, scoped, tag = 'internal scratch']
  %s0 = inlined_call_operand.vmem [shape: f32[8,256], index: 0, kind: input, shape index: {}]
  %s1 = inlined_call_operand.vmem [shape: f32[256,128], index: 1, kind: input, shape index: {}]
  %s2 = inlined_call_operand.vmem [shape: f32[1,128], index: 2, kind: input, shape index: {}]
  %s3 = inlined_call_operand.vmem [shape: f32[8,128], index: 3, kind: output, shape index: {}]
  %s4 = sld [smem:[#allocation0]]
  $region22: #{discriminator_forward.1} parent=0
    _
  %s6 = ssub.s32 1, %s4
  %s7 = scalar_select 0, %s6, %s4
  // Predicated region
  $region2: #{discriminator_forward.1} parent=0 // pred_check
    _
  $region3: #{discriminator_forward.1} parent=0 // pred_check_branch
    %9 = sbr.rel (0) target = $region5
  $region4: #{discriminator_forward.1} parent=0 // pred_region
    _
  $region5: #{discriminator_forward.1} parent=0 // pred_fallthru
    _
  // Predicated region
  $region6: #{discriminator_forward.1} parent=0 // pred_check
    _
  $region7: #{discriminator_forward.1} parent=0 // pred_check_branch
    %11 = sbr.rel (0) target = $region9
  $region8: #{discriminator_forward.1} parent=0 // pred_region
    _
  $region9: #{discriminator_forward.1} parent=0 // pred_fallthru
    _
  // Predicated region
  $region10: #{discriminator_forward.1} parent=0 // pred_check
    _
  $region11: #{discriminator_forward.1} parent=0 // pred_check_branch
    %13 = sbr.rel (0) target = $region13
  $region12: #{discriminator_forward.1} parent=0 // pred_region
    _
  $region13: #{discriminator_forward.1} parent=0 // pred_fallthru
    _
  %v14 = vld [vmem:[%s0] sm:$0xff]
  %v15 = vld [vmem:[%s0 + $0x8] sm:$0xff]
  %v16 = vld [vmem:[%s1] sm:$0xff]
  %v17 = vld [vmem:[%s1 + $0x8] sm:$0xff]
  %v18 = vld [vmem:[%s1 + $0x10] sm:$0xff]
  %v19 = vld [vmem:[%s1 + $0x18] sm:$0xff]
  %v20 = vld [vmem:[%s1 + $0x20] sm:$0xff]
  %v21 = vld [vmem:[%s1 + $0x28] sm:$0xff]
  %v22 = vld [vmem:[%s1 + $0x30] sm:$0xff]
  %v23 = vld [vmem:[%s1 + $0x38] sm:$0xff]
  %v24 = vld [vmem:[%s1 + $0x40] sm:$0xff]
  %v25 = vld [vmem:[%s1 + $0x48] sm:$0xff]
  %v26 = vld [vmem:[%s1 + $0x50] sm:$0xff]
  %v27 = vld [vmem:[%s1 + $0x58] sm:$0xff]
  %v28 = vld [vmem:[%s1 + $0x60] sm:$0xff]
  %v29 = vld [vmem:[%s1 + $0x68] sm:$0xff]
  %v30 = vld [vmem:[%s1 + $0x70] sm:$0xff]
  %v31 = vld [vmem:[%s1 + $0x78] sm:$0xff]
  %v32 = vld [vmem:[%s1 + $0x80] sm:$0xff]
  %v33 = vld [vmem:[%s1 + $0x88] sm:$0xff]
  %v34 = vld [vmem:[%s1 + $0x90] sm:$0xff]
  %v35 = vld [vmem:[%s1 + $0x98] sm:$0xff]
  %v36 = vld [vmem:[%s1 + $0xa0] sm:$0xff]
  %v37 = vld [vmem:[%s1 + $0xa8] sm:$0xff]
  %v38 = vld [vmem:[%s1 + $0xb0] sm:$0xff]
  %v39 = vld [vmem:[%s1 + $0xb8] sm:$0xff]
  %v40 = vld [vmem:[%s1 + $0xc0] sm:$0xff]
  %v41 = vld [vmem:[%s1 + $0xc8] sm:$0xff]
  %v42 = vld [vmem:[%s1 + $0xd0] sm:$0xff]
  %v43 = vld [vmem:[%s1 + $0xd8] sm:$0xff]
  %v44 = vld [vmem:[%s1 + $0xe0] sm:$0xff]
  %v45 = vld [vmem:[%s1 + $0xe8] sm:$0xff]
  %v46 = vld [vmem:[%s1 + $0xf0] sm:$0xff]
  %v47 = vld [vmem:[%s1 + $0xf8] sm:$0xff]
  %v48 = vld [vmem:[%s2] sm:$0x1]
  %v50 = vlaneseq
  %v51 = vshrl.u32 %v50, 7
  %v52 = vsub.s32 0, %v51
  %v53 = vrot.slane %v48, %v52
  %55 = vmatprep.subr.mxu0 0.0
  %56 = vmatpush1.msra.mxu0 %v31
  %57 = vmatprep.subr.mxu0 0.0
  %58 = vmatpush1.msra.mxu0 %v30
  %59 = vmatprep.subr.mxu0 0.0
  %60 = vmatpush1.msra.mxu0 %v29
  %61 = vmatprep.subr.mxu0 0.0
  %62 = vmatpush1.msra.mxu0 %v28
  %63 = vmatprep.subr.mxu0 0.0
  %64 = vmatpush1.msra.mxu0 %v27
  %65 = vmatprep.subr.mxu0 0.0
  %66 = vmatpush1.msra.mxu0 %v26
  %67 = vmatprep.subr.mxu0 0.0
  %68 = vmatpush1.msra.mxu0 %v25
  %69 = vmatprep.subr.mxu0 0.0
  %70 = vmatpush1.msra.mxu0 %v24
  %71 = vmatprep.subr.mxu0 0.0
  %72 = vmatpush1.msra.mxu0 %v23
  %73 = vmatprep.subr.mxu0 0.0
  %74 = vmatpush1.msra.mxu0 %v22
  %75 = vmatprep.subr.mxu0 0.0
  %76 = vmatpush1.msra.mxu0 %v21
  %77 = vmatprep.subr.mxu0 0.0
  %78 = vmatpush1.msra.mxu0 %v20
  %79 = vmatprep.subr.mxu0 0.0
  %80 = vmatpush1.msra.mxu0 %v19
  %81 = vmatprep.subr.mxu0 0.0
  %82 = vmatpush1.msra.mxu0 %v18
  %83 = vmatprep.subr.mxu0 0.0
  %84 = vmatpush1.msra.mxu0 %v17
  %85 = vmatprep.subr.mxu0 0.0
  %86 = vmatpush1.msra.mxu0 %v16
  %87 = vmatprep.subr.mxu0 0.0
  %88 = vmatpush2.msra.mxu0 %v47
  %89 = vmatprep.subr.mxu0 0.0
  %90 = vmatpush2.msra.mxu0 %v46
  %91 = vmatprep.subr.mxu0 0.0
  %92 = vmatpush2.msra.mxu0 %v45
  %93 = vmatprep.subr.mxu0 0.0
  %94 = vmatpush2.msra.mxu0 %v44
  %95 = vmatprep.subr.mxu0 0.0
  %96 = vmatpush2.msra.mxu0 %v43
  %97 = vmatprep.subr.mxu0 0.0
  %98 = vmatpush2.msra.mxu0 %v42
  %99 = vmatprep.subr.mxu0 0.0
  %100 = vmatpush2.msra.mxu0 %v41
  %101 = vmatprep.subr.mxu0 0.0
  %102 = vmatpush2.msra.mxu0 %v40
  %103 = vmatprep.subr.mxu0 0.0
  %104 = vmatpush2.msra.mxu0 %v39
  %105 = vmatprep.subr.mxu0 0.0
  %106 = vmatpush2.msra.mxu0 %v38
  %107 = vmatprep.subr.mxu0 0.0
  %108 = vmatpush2.msra.mxu0 %v37
  %109 = vmatprep.subr.mxu0 0.0
  %110 = vmatpush2.msra.mxu0 %v36
  %111 = vmatprep.subr.mxu0 0.0
  %112 = vmatpush2.msra.mxu0 %v35
  %113 = vmatprep.subr.mxu0 0.0
  %114 = vmatpush2.msra.mxu0 %v34
  %115 = vmatprep.subr.mxu0 0.0
  %116 = vmatpush2.msra.mxu0 %v33
  %117 = vmatprep.subr.mxu0 0.0
  %118 = vmatpush2.msra.mxu0 %v32
  %119 = vmatprep.mubr.f32.mxu0 %v15
  %120 = vmatmul.mubr.f32.gmra.mxu0 %v14
  %v121 = vpop.f32.mrf.mxu0
  %v122 = vadd.f32 %v53, %v121
  %v123 = vpop.f32.mrf.mxu0
  %124 = vdwg.mxu0
  %125 = vst [vmem:[%s3] sm:$0xff] %v122
  // Predicated region
  $region14: #{discriminator_forward.1} parent=0 // pred_check
    _
  $region15: #{discriminator_forward.1} parent=0 // pred_check_branch
    %127 = sbr.rel (0) target = $region17
  $region16: #{discriminator_forward.1} parent=0 // pred_region
    _
  $region17: #{discriminator_forward.1} parent=0 // pred_fallthru
    _
  // Predicated region
  $region18: #{discriminator_forward.1} parent=0 // pred_check
    _
  $region19: #{discriminator_forward.1} parent=0 // pred_check_branch
    %129 = sbr.rel (0) target = $region21
  $region20: #{discriminator_forward.1} parent=0 // pred_region
    _
  $region21: #{discriminator_forward.1} parent=0 // pred_fallthru
    _

</llo_original>
